<compile_context>
chip_gen: v6e
topology: v6e:2x2x1
jax: 0.10.0
libtpu: 0.0.40
codegen_flags: <defaults>
</compile_context>

<pallas_src>
import jax
import jax.numpy as jnp
from jax.experimental import pallas as pl
from jax.experimental.pallas import tpu as pltpu

# Layer sizes from the PyTorch module.
DIMS = [51, 50, 48, 46, 44, 2]
PAD = 128                # padded hidden width (lane-dense); do NOT go to 256
DEFAULT_TILE_M = 2048    # batch rows per grid step (sweepable)


def _round_up(x, m):
    return (x + m - 1) // m * m


def mlp_kernel(x_ref,
               w1_ref, b1_ref,
               w2_ref, b2_ref,
               w3_ref, b3_ref,
               w4_ref, b4_ref,
               w5_ref, b5_ref,
               o_ref):
    """One batch tile: x (tm, 51) f32 -> out (tm, 2) f32; params resident in VMEM.

    Weights are bf16; dot inputs are cast to bf16, accumulation and all
    elementwise math stay f32.
    """
    h = x_ref[...]                                                 # (tm, 51) f32

    h = jnp.dot(h.astype(jnp.bfloat16), w1_ref[...],
                preferred_element_type=jnp.float32) + b1_ref[...]
    h = jnp.maximum(h, 0.0)

    h = jnp.dot(h.astype(jnp.bfloat16), w2_ref[...],
                preferred_element_type=jnp.float32) + b2_ref[...]
    h = jnp.maximum(h, 0.0)

    h = jnp.dot(h.astype(jnp.bfloat16), w3_ref[...],
                preferred_element_type=jnp.float32) + b3_ref[...]
    h = jnp.maximum(h, 0.0)

    h = jnp.dot(h.astype(jnp.bfloat16), w4_ref[...],
                preferred_element_type=jnp.float32) + b4_ref[...]
    h = jnp.maximum(h, 0.0)

    h = jnp.dot(h.astype(jnp.bfloat16), w5_ref[...],
                preferred_element_type=jnp.float32) + b5_ref[...]  # (tm, 2) f32

    # exp goes to the EUP slot; 2-lane masked store is hidden under MXU slack.
    o_ref[...] = jax.nn.sigmoid(h)


def net_forward(x, params, *, tile_m=DEFAULT_TILE_M):
    """x: (B, 51) float32. params: list of (W_t, b) with W_t = (in, out)."""
    B, F = x.shape
    assert F == DIMS[0], (B, F)
    F_OUT = DIMS[-1]

    # --- Pad params once (zeros elsewhere); weights in bf16, biases in f32.
    # Layer i: in-dim padded to PAD (except layer 1 keeps in=51),
    #          out-dim padded to PAD (except last layer keeps out=2).
    padded_params = []
    n_layers = len(params)
    for li, (w_t, b) in enumerate(params):
        fi, fo = w_t.shape
        in_p = fi if li == 0 else PAD
        out_p = F_OUT if li == n_layers - 1 else PAD
        w_pad = jnp.zeros((in_p, out_p), jnp.float32).at[:fi, :fo].set(
            w_t.astype(jnp.float32)).astype(jnp.bfloat16)
        b_pad = jnp.zeros((1, out_p), jnp.float32).at[0, :fo].set(
            b.astype(jnp.float32))
        padded_params.append((w_pad, b_pad))

    # --- Tile size: keep >= 2 grid steps when batch allows (v7x megacore),
    #     block sublane dim must be a multiple of 8.
    tm = min(tile_m, _round_up(pl.cdiv(B, 2), 8))
    Bp = _round_up(B, tm)
    if Bp != B:
        x_in = jnp.pad(x.astype(jnp.float32), ((0, Bp - B), (0, 0)))
    else:
        x_in = x.astype(jnp.float32)

    grid = (Bp // tm,)

    flat_args = [x_in]
    in_specs = [pl.BlockSpec((tm, F), lambda i: (i, 0))]          # streamed
    for (w_pad, b_pad) in padded_params:
        flat_args += [w_pad, b_pad]
        in_specs += [
            pl.BlockSpec(w_pad.shape, lambda i: (0, 0)),          # resident
            pl.BlockSpec(b_pad.shape, lambda i: (0, 0)),          # resident
        ]

    # Advisory cost estimate (padded shapes actually executed).
    pdims = [F] + [PAD] * (n_layers - 1) + [F_OUT]
    flops = 2 * Bp * sum(pdims[i] * pdims[i + 1] for i in range(n_layers))
    bytes_accessed = (
        Bp * F * 4                                                # x stream
        + Bp * F_OUT * 4                                          # output
        + sum(w.size * 2 + b.size * 4 for w, b in padded_params))
    cost = pl.CostEstimate(flops=flops,
                           transcendentals=Bp * F_OUT,
                           bytes_accessed=bytes_accessed)

    out_pad = pl.pallas_call(
        mlp_kernel,
        out_shape=jax.ShapeDtypeStruct((Bp, F_OUT), jnp.float32),
        grid=grid,
        in_specs=in_specs,
        out_specs=pl.BlockSpec((tm, F_OUT), lambda i: (i, 0)),
        compiler_params=pltpu.CompilerParams(
            dimension_semantics=("parallel",),       # megacore on v7x
            vmem_limit_bytes=32 * 1024 * 1024),      # safe on v5e/v6e/v7x
        cost_estimate=cost,
    )(*flat_args)

    # Slice away any batch padding (rows only; output is already 2 lanes).
    return out_pad[:B]


def init_params(key):
    """Deterministic init mimicking nn.Linear default (uniform +/- 1/sqrt(in))."""
    params = []
    for i in range(len(DIMS) - 1):
        fan_in, fan_out = DIMS[i], DIMS[i + 1]
        key, kw, kb = jax.random.split(key, 3)
        bound = 1.0 / jnp.sqrt(fan_in)
        # PyTorch weight shape is (out, in); store transposed as (in, out).
        w_t = jax.random.uniform(kw, (fan_in, fan_out), jnp.float32,
                                 minval=-bound, maxval=bound)
        b = jax.random.uniform(kb, (fan_out,), jnp.float32,
                               minval=-bound, maxval=bound)
        params.append((w_t, b))
    return params


def reference_forward(x, params):
    """f32 reference (kernel uses bf16 dot inputs, so compare with loose tol)."""
    h = x.astype(jnp.float32)
    for i, (w_t, b) in enumerate(params):
        h = h @ w_t + b
        if i < len(params) - 1:
            h = jnp.maximum(h, 0.0)
    return jax.nn.sigmoid(h)


if __name__ == "__main__":
    key = jax.random.PRNGKey(0)
    key, kx = jax.random.split(key)

    B = 8
    x = jax.random.normal(kx, (B, DIMS[0]), jnp.float32)
    params = init_params(key)

    out = net_forward(x, params)
    out = jax.block_until_ready(out)

    ref = reference_forward(x, params)
    assert out.shape == (B, 2), out.shape
    # bf16 dot inputs (f32 accumulation) -> loosen tolerance vs f32 reference.
    assert jnp.allclose(out, ref, atol=2e-2, rtol=2e-2), "mismatch vs reference"

    print("KERNEL_OK")
</pallas_src>

<mosaic_0001>
module attributes {stable_mosaic.version = 11 : i64} {
  func.func @mlp_kernel(%arg0: i32, %arg1: memref<8x51xf32, #tpu.memory_space<vmem>>, %arg2: memref<51x128xbf16, #tpu.memory_space<vmem>>, %arg3: memref<1x128xf32, #tpu.memory_space<vmem>>, %arg4: memref<128x128xbf16, #tpu.memory_space<vmem>>, %arg5: memref<1x128xf32, #tpu.memory_space<vmem>>, %arg6: memref<128x128xbf16, #tpu.memory_space<vmem>>, %arg7: memref<1x128xf32, #tpu.memory_space<vmem>>, %arg8: memref<128x128xbf16, #tpu.memory_space<vmem>>, %arg9: memref<1x128xf32, #tpu.memory_space<vmem>>, %arg10: memref<128x2xbf16, #tpu.memory_space<vmem>>, %arg11: memref<1x2xf32, #tpu.memory_space<vmem>>, %arg12: memref<8x2xf32, #tpu.memory_space<vmem>>) attributes {dimension_semantics = [#tpu.dimension_semantics<parallel>], iteration_bounds = array<i64: 1>, scalar_prefetch = 0 : i64, scratch_operands = 0 : i64, tpu.core_type = #tpu.core_type<tc>, window_params = [{transform_indices = @transform_0, window_bounds = array<i64: 8, 51>}, {pipeline_mode = #tpu.pipeline_mode<synchronous>, transform_indices = @transform_1, window_bounds = array<i64: 51, 128>}, {pipeline_mode = #tpu.pipeline_mode<synchronous>, transform_indices = @transform_2, window_bounds = array<i64: 1, 128>}, {pipeline_mode = #tpu.pipeline_mode<synchronous>, transform_indices = @transform_3, window_bounds = array<i64: 128, 128>}, {pipeline_mode = #tpu.pipeline_mode<synchronous>, transform_indices = @transform_4, window_bounds = array<i64: 1, 128>}, {pipeline_mode = #tpu.pipeline_mode<synchronous>, transform_indices = @transform_5, window_bounds = array<i64: 128, 128>}, {pipeline_mode = #tpu.pipeline_mode<synchronous>, transform_indices = @transform_6, window_bounds = array<i64: 1, 128>}, {pipeline_mode = #tpu.pipeline_mode<synchronous>, transform_indices = @transform_7, window_bounds = array<i64: 128, 128>}, {pipeline_mode = #tpu.pipeline_mode<synchronous>, transform_indices = @transform_8, window_bounds = array<i64: 1, 128>}, {pipeline_mode = #tpu.pipeline_mode<synchronous>, transform_indices = @transform_9, window_bounds = array<i64: 128, 2>}, {pipeline_mode = #tpu.pipeline_mode<synchronous>, transform_indices = @transform_10, window_bounds = array<i64: 1, 2>}, {transform_indices = @transform_11, window_bounds = array<i64: 8, 2>}]} {
    %c0 = arith.constant 0 : index
    %c0_0 = arith.constant 0 : index
    %0 = vector.load %arg1[%c0, %c0_0] : memref<8x51xf32, #tpu.memory_space<vmem>>, vector<8x51xf32>
    %1 = arith.truncf %0 : vector<8x51xf32> to vector<8x51xbf16>
    %c0_1 = arith.constant 0 : index
    %c0_2 = arith.constant 0 : index
    %2 = vector.load %arg2[%c0_1, %c0_2] : memref<51x128xbf16, #tpu.memory_space<vmem>>, vector<51x128xbf16>
    %cst = arith.constant dense<0.000000e+00> : vector<8x128xf32>
    %3 = tpu.matmul %1, %2, %cst {dimension_numbers = #tpu.dot_dimension_numbers<[1], [0], [0], [1], [0, 0, 1, 1], [], []>} : vector<8x51xbf16>, vector<51x128xbf16>, vector<8x128xf32> -> vector<8x128xf32>
    %c0_3 = arith.constant 0 : index
    %c0_4 = arith.constant 0 : index
    %4 = vector.load %arg3[%c0_3, %c0_4] : memref<1x128xf32, #tpu.memory_space<vmem>>, vector<1x128xf32>
    %5 = vector.broadcast %4 : vector<1x128xf32> to vector<8x128xf32>
    %6 = arith.addf %3, %5 : vector<8x128xf32>
    %cst_5 = arith.constant 0.000000e+00 : f32
    %7 = vector.broadcast %cst_5 : f32 to vector<8x128xf32>
    %8 = arith.maximumf %6, %7 : vector<8x128xf32>
    %9 = arith.truncf %8 : vector<8x128xf32> to vector<8x128xbf16>
    %c0_6 = arith.constant 0 : index
    %c0_7 = arith.constant 0 : index
    %10 = vector.load %arg4[%c0_6, %c0_7] : memref<128x128xbf16, #tpu.memory_space<vmem>>, vector<128x128xbf16>
    %cst_8 = arith.constant dense<0.000000e+00> : vector<8x128xf32>
    %11 = tpu.matmul %9, %10, %cst_8 {dimension_numbers = #tpu.dot_dimension_numbers<[1], [0], [0], [1], [0, 0, 1, 1], [], []>} : vector<8x128xbf16>, vector<128x128xbf16>, vector<8x128xf32> -> vector<8x128xf32>
    %c0_9 = arith.constant 0 : index
    %c0_10 = arith.constant 0 : index
    %12 = vector.load %arg5[%c0_9, %c0_10] : memref<1x128xf32, #tpu.memory_space<vmem>>, vector<1x128xf32>
    %13 = vector.broadcast %12 : vector<1x128xf32> to vector<8x128xf32>
    %14 = arith.addf %11, %13 : vector<8x128xf32>
    %cst_11 = arith.constant 0.000000e+00 : f32
    %15 = vector.broadcast %cst_11 : f32 to vector<8x128xf32>
    %16 = arith.maximumf %14, %15 : vector<8x128xf32>
    %17 = arith.truncf %16 : vector<8x128xf32> to vector<8x128xbf16>
    %c0_12 = arith.constant 0 : index
    %c0_13 = arith.constant 0 : index
    %18 = vector.load %arg6[%c0_12, %c0_13] : memref<128x128xbf16, #tpu.memory_space<vmem>>, vector<128x128xbf16>
    %cst_14 = arith.constant dense<0.000000e+00> : vector<8x128xf32>
    %19 = tpu.matmul %17, %18, %cst_14 {dimension_numbers = #tpu.dot_dimension_numbers<[1], [0], [0], [1], [0, 0, 1, 1], [], []>} : vector<8x128xbf16>, vector<128x128xbf16>, vector<8x128xf32> -> vector<8x128xf32>
    %c0_15 = arith.constant 0 : index
    %c0_16 = arith.constant 0 : index
    %20 = vector.load %arg7[%c0_15, %c0_16] : memref<1x128xf32, #tpu.memory_space<vmem>>, vector<1x128xf32>
    %21 = vector.broadcast %20 : vector<1x128xf32> to vector<8x128xf32>
    %22 = arith.addf %19, %21 : vector<8x128xf32>
    %cst_17 = arith.constant 0.000000e+00 : f32
    %23 = vector.broadcast %cst_17 : f32 to vector<8x128xf32>
    %24 = arith.maximumf %22, %23 : vector<8x128xf32>
    %25 = arith.truncf %24 : vector<8x128xf32> to vector<8x128xbf16>
    %c0_18 = arith.constant 0 : index
    %c0_19 = arith.constant 0 : index
    %26 = vector.load %arg8[%c0_18, %c0_19] : memref<128x128xbf16, #tpu.memory_space<vmem>>, vector<128x128xbf16>
    %cst_20 = arith.constant dense<0.000000e+00> : vector<8x128xf32>
    %27 = tpu.matmul %25, %26, %cst_20 {dimension_numbers = #tpu.dot_dimension_numbers<[1], [0], [0], [1], [0, 0, 1, 1], [], []>} : vector<8x128xbf16>, vector<128x128xbf16>, vector<8x128xf32> -> vector<8x128xf32>
    %c0_21 = arith.constant 0 : index
    %c0_22 = arith.constant 0 : index
    %28 = vector.load %arg9[%c0_21, %c0_22] : memref<1x128xf32, #tpu.memory_space<vmem>>, vector<1x128xf32>
    %29 = vector.broadcast %28 : vector<1x128xf32> to vector<8x128xf32>
    %30 = arith.addf %27, %29 : vector<8x128xf32>
    %cst_23 = arith.constant 0.000000e+00 : f32
    %31 = vector.broadcast %cst_23 : f32 to vector<8x128xf32>
    %32 = arith.maximumf %30, %31 : vector<8x128xf32>
    %33 = arith.truncf %32 : vector<8x128xf32> to vector<8x128xbf16>
    %c0_24 = arith.constant 0 : index
    %c0_25 = arith.constant 0 : index
    %34 = vector.load %arg10[%c0_24, %c0_25] : memref<128x2xbf16, #tpu.memory_space<vmem>>, vector<128x2xbf16>
    %cst_26 = arith.constant dense<0.000000e+00> : vector<8x2xf32>
    %35 = tpu.matmul %33, %34, %cst_26 {dimension_numbers = #tpu.dot_dimension_numbers<[1], [0], [0], [1], [0, 0, 1, 1], [], []>} : vector<8x128xbf16>, vector<128x2xbf16>, vector<8x2xf32> -> vector<8x2xf32>
    %c0_27 = arith.constant 0 : index
    %c0_28 = arith.constant 0 : index
    %36 = vector.load %arg11[%c0_27, %c0_28] : memref<1x2xf32, #tpu.memory_space<vmem>>, vector<1x2xf32>
    %37 = vector.broadcast %36 : vector<1x2xf32> to vector<8x2xf32>
    %38 = arith.addf %35, %37 : vector<8x2xf32>
    %39 = arith.negf %38 : vector<8x2xf32>
    %40 = math.exp %39 : vector<8x2xf32>
    %cst_29 = arith.constant 1.000000e+00 : f32
    %41 = vector.broadcast %cst_29 : f32 to vector<8x2xf32>
    %42 = arith.addf %41, %40 : vector<8x2xf32>
    %43 = arith.divf %41, %42 : vector<8x2xf32>
    %c0_30 = arith.constant 0 : index
    %c0_31 = arith.constant 0 : index
    %44 = vector.load %arg12[%c0_30, %c0_31] : memref<8x2xf32, #tpu.memory_space<vmem>>, vector<8x2xf32>
    tpu.vector_store %arg12[%c0_30, %c0_31], %43 {strides = array<i32>} : memref<8x2xf32, #tpu.memory_space<vmem>>, vector<8x2xf32>,
    return
  }
  func.func @transform_0(%arg0: i32) -> (i32, i32) {
    %c0_i32 = arith.constant 0 : i32
    %c0_i32_0 = arith.constant 0 : i32
    return %arg0, %c0_i32 : i32, i32
  }
  func.func @transform_1(%arg0: i32) -> (i32, i32) {
    %c0_i32 = arith.constant 0 : i32
    %c0_i32_0 = arith.constant 0 : i32
    %c0_i32_1 = arith.constant 0 : i32
    return %c0_i32, %c0_i32_0 : i32, i32
  }
  func.func @transform_2(%arg0: i32) -> (i32, i32) {
    %c0_i32 = arith.constant 0 : i32
    %c0_i32_0 = arith.constant 0 : i32
    %c0_i32_1 = arith.constant 0 : i32
    return %c0_i32, %c0_i32_0 : i32, i32
  }
  func.func @transform_3(%arg0: i32) -> (i32, i32) {
    %c0_i32 = arith.constant 0 : i32
    %c0_i32_0 = arith.constant 0 : i32
    %c0_i32_1 = arith.constant 0 : i32
    return %c0_i32, %c0_i32_0 : i32, i32
  }
  func.func @transform_4(%arg0: i32) -> (i32, i32) {
    %c0_i32 = arith.constant 0 : i32
    %c0_i32_0 = arith.constant 0 : i32
    %c0_i32_1 = arith.constant 0 : i32
    return %c0_i32, %c0_i32_0 : i32, i32
  }
  func.func @transform_5(%arg0: i32) -> (i32, i32) {
    %c0_i32 = arith.constant 0 : i32
    %c0_i32_0 = arith.constant 0 : i32
    %c0_i32_1 = arith.constant 0 : i32
    return %c0_i32, %c0_i32_0 : i32, i32
  }
  func.func @transform_6(%arg0: i32) -> (i32, i32) {
    %c0_i32 = arith.constant 0 : i32
    %c0_i32_0 = arith.constant 0 : i32
    %c0_i32_1 = arith.constant 0 : i32
    return %c0_i32, %c0_i32_0 : i32, i32
  }
  func.func @transform_7(%arg0: i32) -> (i32, i32) {
    %c0_i32 = arith.constant 0 : i32
    %c0_i32_0 = arith.constant 0 : i32
    %c0_i32_1 = arith.constant 0 : i32
    return %c0_i32, %c0_i32_0 : i32, i32
  }
  func.func @transform_8(%arg0: i32) -> (i32, i32) {
    %c0_i32 = arith.constant 0 : i32
    %c0_i32_0 = arith.constant 0 : i32
    %c0_i32_1 = arith.constant 0 : i32
    return %c0_i32, %c0_i32_0 : i32, i32
  }
  func.func @transform_9(%arg0: i32) -> (i32, i32) {
    %c0_i32 = arith.constant 0 : i32
    %c0_i32_0 = arith.constant 0 : i32
    %c0_i32_1 = arith.constant 0 : i32
    return %c0_i32, %c0_i32_0 : i32, i32
  }
  func.func @transform_10(%arg0: i32) -> (i32, i32) {
    %c0_i32 = arith.constant 0 : i32
    %c0_i32_0 = arith.constant 0 : i32
    %c0_i32_1 = arith.constant 0 : i32
    return %c0_i32, %c0_i32_0 : i32, i32
  }
  func.func @transform_11(%arg0: i32) -> (i32, i32) {
    %c0_i32 = arith.constant 0 : i32
    %c0_i32_0 = arith.constant 0 : i32
    return %arg0, %c0_i32 : i32, i32
  }
}

</mosaic_0001>

<llo_original>
// kernel: tpu_custom_call.1
$region0: #{tpu_custom_call.1}
  #allocation0 [shape = 'u32[]', space=smem, size = 0x4, offset = 0x4, fixed_abs, tag = 'smem constant byte address 0x4 - core index']
  #allocation1 [shape = 'u32[144,128]{1,0:T(1,128)}', space=vmem, size = 0x12000, scoped, tag = 'internal scratch']
  %s0 = inlined_call_operand.hbm [shape: f32[8,51], index: 0, kind: input, shape index: {}]
  %s1 = inlined_call_operand.hbm [shape: bf16[51,128], index: 1, kind: input, shape index: {}]
  %s2 = inlined_call_operand.vmem [shape: f32[1,128], index: 2, kind: input, shape index: {}]
  %s3 = inlined_call_operand.vmem [shape: bf16[128,128], index: 3, kind: input, shape index: {}]
  %s4 = inlined_call_operand.vmem [shape: f32[1,128], index: 4, kind: input, shape index: {}]
  %s5 = inlined_call_operand.hbm [shape: bf16[128,128], index: 5, kind: input, shape index: {}]
  %s6 = inlined_call_operand.vmem [shape: f32[1,128], index: 6, kind: input, shape index: {}]
  %s7 = inlined_call_operand.hbm [shape: bf16[128,128], index: 7, kind: input, shape index: {}]
  %s8 = inlined_call_operand.vmem [shape: f32[1,128], index: 8, kind: input, shape index: {}]
  %s9 = inlined_call_operand.vmem [shape: bf16[128,2], index: 9, kind: input, shape index: {}]
  %s10 = inlined_call_operand.vmem [shape: f32[1,2], index: 10, kind: input, shape index: {}]
  %s11 = inlined_call_operand.vmem [shape: f32[8,2], index: 11, kind: output, shape index: {}]
  %s12 = sld [smem:[#allocation0]]
  $region70: #{tpu_custom_call.1} parent=0
    _
  %s14 = ssub.s32 1, %s12
  %s15 = scalar_select 0, %s14, %s12
  $region1: #{tpu_custom_call.1} parent=0
    #allocation2 [shape = 'u8[4096]{0}', space=vmem, size = 0x1000, scoped, tag = 'input window, operand 0, single buffered']
    #allocation3 [shape = 's32[1]{0}', space=sflag, size = 0x4, scoped, tag = 'scoped memory for tpu_custom_call.1']
    #allocation4 [shape = 'u8[14336]{0}', space=vmem, size = 0x3800, scoped, tag = 'input window, operand 1, single buffered']
    #allocation5 [shape = 's32[1]{0}', space=sflag, size = 0x4, scoped, tag = 'scoped memory for tpu_custom_call.1']
    #allocation6 [shape = 'u8[32768]{0}', space=vmem, size = 0x8000, scoped, tag = 'input window, operand 5, single buffered']
    #allocation7 [shape = 'u8[32768]{0}', space=vmem, size = 0x8000, scoped, tag = 'input window, operand 7, single buffered']
    #allocation8 [shape = 's32[1]{0}', space=sflag, size = 0x4, scoped, tag = 'scoped memory for tpu_custom_call.1']
    %16 = vsyncpa [#allocation3], 0
    %17 = vsyncpa [#allocation5], 0
    %18 = vsyncpa [#allocation8], 0
    // Predicated region
    $region2: #{tpu_custom_call.1} parent=1 // pred_check
      _
    $region3: #{tpu_custom_call.1} parent=1 // pred_check_branch
      %20 = sbr.rel (0) target = $region5
    $region4: #{tpu_custom_call.1} parent=1 // pred_region
      %s22 = ssub.s32 128, 128
      %23 = vsyncadd [#allocation3], %s22
      %s25 = sshll.u32 [#allocation2], 4
      %s26 = int_to_ptr.vmem [resolvable:$true] %s25
      %28 = dma.hbm_to_vmem [thread:$0]  %s0, 128, %s26, [#allocation3]
    $region5: #{tpu_custom_call.1} parent=1 // pred_fallthru
      _
    // Predicated region
    $region6: #{tpu_custom_call.1} parent=1 // pred_check
      _
    $region7: #{tpu_custom_call.1} parent=1 // pred_check_branch
      %30 = sbr.rel (0) target = $region9
    $region8: #{tpu_custom_call.1} parent=1 // pred_region
      %s32 = ssub.s32 448, 448
      %33 = vsyncadd [#allocation5], %s32
      %s34 = sshll.u32 [#allocation4], 4
      %s35 = int_to_ptr.vmem [resolvable:$true] %s34
      %40 = dma.hbm_to_vmem [thread:$0]  %s1, 448, %s35, [#allocation5], 64, 64, 4
    $region9: #{tpu_custom_call.1} parent=1 // pred_fallthru
      _
    // Predicated region
    $region10: #{tpu_custom_call.1} parent=1 // pred_check
      _
    $region11: #{tpu_custom_call.1} parent=1 // pred_check_branch
      %42 = sbr.rel (0) target = $region13
    $region12: #{tpu_custom_call.1} parent=1 // pred_region
      _
    $region13: #{tpu_custom_call.1} parent=1 // pred_fallthru
      _
    // Predicated region
    $region14: #{tpu_custom_call.1} parent=1 // pred_check
      _
    $region15: #{tpu_custom_call.1} parent=1 // pred_check_branch
      %44 = sbr.rel (0) target = $region17
    $region16: #{tpu_custom_call.1} parent=1 // pred_region
      _
    $region17: #{tpu_custom_call.1} parent=1 // pred_fallthru
      _
    // Predicated region
    $region18: #{tpu_custom_call.1} parent=1 // pred_check
      _
    $region19: #{tpu_custom_call.1} parent=1 // pred_check_branch
      %46 = sbr.rel (0) target = $region21
    $region20: #{tpu_custom_call.1} parent=1 // pred_region
      _
    $region21: #{tpu_custom_call.1} parent=1 // pred_fallthru
      _
    // Predicated region
    $region22: #{tpu_custom_call.1} parent=1 // pred_check
      _
    $region23: #{tpu_custom_call.1} parent=1 // pred_check_branch
      %48 = sbr.rel (0) target = $region25
    $region24: #{tpu_custom_call.1} parent=1 // pred_region
      %s50 = ssub.s32 1024, 1024
      %51 = vsyncadd [#allocation5], %s50
      %s52 = sshll.u32 [#allocation6], 4
      %s53 = int_to_ptr.vmem [resolvable:$true] %s52
      %58 = dma.hbm_to_vmem [thread:$0]  %s5, 1024, %s53, [#allocation5], 64, 64, 4
    $region25: #{tpu_custom_call.1} parent=1 // pred_fallthru
      _
    // Predicated region
    $region26: #{tpu_custom_call.1} parent=1 // pred_check
      _
    $region27: #{tpu_custom_call.1} parent=1 // pred_check_branch
      %60 = sbr.rel (0) target = $region29
    $region28: #{tpu_custom_call.1} parent=1 // pred_region
      _
    $region29: #{tpu_custom_call.1} parent=1 // pred_fallthru
      _
    // Predicated region
    $region30: #{tpu_custom_call.1} parent=1 // pred_check
      _
    $region31: #{tpu_custom_call.1} parent=1 // pred_check_branch
      %62 = sbr.rel (0) target = $region33
    $region32: #{tpu_custom_call.1} parent=1 // pred_region
      %s64 = ssub.s32 1024, 1024
      %65 = vsyncadd [#allocation8], %s64
      %s66 = sshll.u32 [#allocation7], 4
      %s67 = int_to_ptr.vmem [resolvable:$true] %s66
      %72 = dma.hbm_to_vmem [thread:$0]  %s7, 1024, %s67, [#allocation8], 64, 64, 4
    $region33: #{tpu_custom_call.1} parent=1 // pred_fallthru
      _
    // Predicated region
    $region34: #{tpu_custom_call.1} parent=1 // pred_check
      _
    $region35: #{tpu_custom_call.1} parent=1 // pred_check_branch
      %74 = sbr.rel (0) target = $region37
    $region36: #{tpu_custom_call.1} parent=1 // pred_region
      _
    $region37: #{tpu_custom_call.1} parent=1 // pred_fallthru
      _
    // Predicated region
    $region38: #{tpu_custom_call.1} parent=1 // pred_check
      _
    $region39: #{tpu_custom_call.1} parent=1 // pred_check_branch
      %76 = sbr.rel (0) target = $region41
    $region40: #{tpu_custom_call.1} parent=1 // pred_region
      _
    $region41: #{tpu_custom_call.1} parent=1 // pred_fallthru
      _
    // Predicated region
    $region42: #{tpu_custom_call.1} parent=1 // pred_check
      _
    $region43: #{tpu_custom_call.1} parent=1 // pred_check_branch
      %78 = sbr.rel (0) target = $region45
    $region44: #{tpu_custom_call.1} parent=1 // pred_region
      _
    $region45: #{tpu_custom_call.1} parent=1 // pred_fallthru
      _
    // Predicated region
    $region46: #{tpu_custom_call.1} parent=1 // pred_check
      _
    $region47: #{tpu_custom_call.1} parent=1 // pred_check_branch
      %80 = sbr.rel (0) target = $region49
    $region48: #{tpu_custom_call.1} parent=1 // pred_region
      %81 = dma.done [#allocation3], 128
    $region49: #{tpu_custom_call.1} parent=1 // pred_fallthru
      _
    // Predicated region
    $region50: #{tpu_custom_call.1} parent=1 // pred_check
      _
    $region51: #{tpu_custom_call.1} parent=1 // pred_check_branch
      %83 = sbr.rel (0) target = $region53
    $region52: #{tpu_custom_call.1} parent=1 // pred_region
      %84 = dma.done [#allocation5], 448
    $region53: #{tpu_custom_call.1} parent=1 // pred_fallthru
      _
    // Predicated region
    $region54: #{tpu_custom_call.1} parent=1 // pred_check
      _
    $region55: #{tpu_custom_call.1} parent=1 // pred_check_branch
      %86 = sbr.rel (0) target = $region57
    $region56: #{tpu_custom_call.1} parent=1 // pred_region
      %87 = dma.done [#allocation5], 1024
    $region57: #{tpu_custom_call.1} parent=1 // pred_fallthru
      _
    // Predicated region
    $region58: #{tpu_custom_call.1} parent=1 // pred_check
      _
    $region59: #{tpu_custom_call.1} parent=1 // pred_check_branch
      %89 = sbr.rel (0) target = $region61
    $region60: #{tpu_custom_call.1} parent=1 // pred_region
      %90 = dma.done [#allocation8], 1024
    $region61: #{tpu_custom_call.1} parent=1 // pred_fallthru
      _
    %v92 = vld [vmem:[#allocation2] sm:$0xff]
    %v93 = vpack.c.bf16 %v92, %v92
    %v94 = vld [vmem:[#allocation4] sm:$0xf]
    %v95 = vld [vmem:[#allocation4 + $0x4] sm:$0xf]
    %v96 = vld [vmem:[#allocation4 + $0x8] sm:$0xf]
    %v97 = vld [vmem:[#allocation4 + $0xc] sm:$0xf]
    %v98 = vld [vmem:[#allocation4 + $0x10] sm:$0xf]
    %v99 = vld [vmem:[#allocation4 + $0x14] sm:$0xf]
    %v100 = vld [vmem:[#allocation4 + $0x18] sm:$0x3]
    %v101 = vld [vmem:[%s2] sm:$0x1]
    %v103 = vlaneseq
    %v104 = vshrl.u32 %v103, 7
    %v105 = vsub.s32 0, %v104
    %v106 = vrot.slane %v101, %v105
    %v115 = vunpack.c.l.b16 %v94
    %v116 = vunpack.c.l.b16 %v95
    %v117 = vunpack.c.l.b16 %v96
    %v118 = vunpack.c.l.b16 %v97
    %v119 = vunpack.c.l.b16 %v98
    %v120 = vunpack.c.l.b16 %v99
    %v121 = vunpack.c.l.b16 %v100
    %v122 = vpack.c.b16 %v116, %v115
    %v123 = vpack.c.b16 %v118, %v117
    %v124 = vpack.c.b16 %v120, %v119
    %v125 = vpack.c.b16 %v121, %v121
    %vm129 = vcmask 416768
    %v131 = vsel %vm129, %v93, 0
    %vm133 = vcmask 1040384
    %vm134 = vcmask 1041408
    %v135 = vsel %vm133, 4294967295, 65535
    %v136 = vsel %vm134, %v135, 0
    %v138 = vand.u32 %v125, %v136
    %140 = vmatprep.subr.bf16.mxu0 0
    %141 = vmatpush1.bf16.msra.mxu0 0
    %142 = vmatprep.subr.bf16.mxu0 0
    %143 = vmatpush1.bf16.msra.mxu0 0
    %144 = vmatprep.subr.bf16.mxu0 0
    %145 = vmatpush1.bf16.msra.mxu0 0
    %146 = vmatprep.subr.bf16.mxu0 0
    %147 = vmatpush1.bf16.msra.mxu0 0
    %148 = vmatprep.subr.bf16.mxu0 0
    %149 = vmatpush1.bf16.msra.mxu0 %v138
    %150 = vmatprep.subr.bf16.mxu0 0
    %151 = vmatpush1.bf16.msra.mxu0 %v124
    %152 = vmatprep.subr.bf16.mxu0 0
    %153 = vmatpush1.bf16.msra.mxu0 %v123
    %154 = vmatprep.subr.bf16.mxu0 0
    %155 = vmatpush1.bf16.msra.mxu0 %v122
    %156 = vmatprep.subr.bf16.mxu0 0
    %157 = vmatpush2.bf16.msra.mxu0 0
    %158 = vmatprep.subr.bf16.mxu0 0
    %159 = vmatpush2.bf16.msra.mxu0 0
    %160 = vmatprep.subr.bf16.mxu0 0
    %161 = vmatpush2.bf16.msra.mxu0 0
    %162 = vmatprep.subr.bf16.mxu0 0
    %163 = vmatpush2.bf16.msra.mxu0 0
    %164 = vmatprep.subr.bf16.mxu0 0
    %165 = vmatpush2.bf16.msra.mxu0 0
    %166 = vmatprep.subr.bf16.mxu0 0
    %167 = vmatpush2.bf16.msra.mxu0 0
    %168 = vmatprep.subr.bf16.mxu0 0
    %169 = vmatpush2.bf16.msra.mxu0 0
    %170 = vmatprep.subr.bf16.mxu0 0
    %171 = vmatpush2.bf16.msra.mxu0 0
    %172 = vmatprep.mubr.bf16.mxu0 0
    %173 = vmatmul.mubr.bf16.gmra.mxu0 %v131
    %v174 = vpop.f32.mrf.mxu0
    %v175 = vadd.f32 %v106, %v174
    %v176 = vpop.f32.mrf.mxu0
    %v177 = vpop.f32.mrf.mxu0
    %v178 = vpop.f32.mrf.mxu0
    %179 = vdwg.mxu0
    %v180 = vmax.f32 %v175, 0.0
    %v181 = vpack.c.bf16 %v180, %v180
    %v182 = vld [vmem:[%s3] sm:$0xf]
    %v183 = vld [vmem:[%s3 + $0x4] sm:$0xf]
    %v184 = vld [vmem:[%s3 + $0x8] sm:$0xf]
    %v185 = vld [vmem:[%s3 + $0xc] sm:$0xf]
    %v186 = vld [vmem:[%s3 + $0x10] sm:$0xf]
    %v187 = vld [vmem:[%s3 + $0x14] sm:$0xf]
    %v188 = vld [vmem:[%s3 + $0x18] sm:$0xf]
    %v189 = vld [vmem:[%s3 + $0x1c] sm:$0xf]
    %v190 = vld [vmem:[%s3 + $0x20] sm:$0xf]
    %v191 = vld [vmem:[%s3 + $0x24] sm:$0xf]
    %v192 = vld [vmem:[%s3 + $0x28] sm:$0xf]
    %v193 = vld [vmem:[%s3 + $0x2c] sm:$0xf]
    %v194 = vld [vmem:[%s3 + $0x30] sm:$0xf]
    %v195 = vld [vmem:[%s3 + $0x34] sm:$0xf]
    %v196 = vld [vmem:[%s3 + $0x38] sm:$0xf]
    %v197 = vld [vmem:[%s3 + $0x3c] sm:$0xf]
    %v198 = vld [vmem:[%s4] sm:$0x1]
    %v200 = vlaneseq
    %v201 = vshrl.u32 %v200, 7
    %v202 = vsub.s32 0, %v201
    %v203 = vrot.slane %v198, %v202
    %v221 = vunpack.c.l.b16 %v182
    %v222 = vunpack.c.l.b16 %v183
    %v223 = vunpack.c.l.b16 %v184
    %v224 = vunpack.c.l.b16 %v185
    %v225 = vunpack.c.l.b16 %v186
    %v226 = vunpack.c.l.b16 %v187
    %v227 = vunpack.c.l.b16 %v188
    %v228 = vunpack.c.l.b16 %v189
    %v229 = vunpack.c.l.b16 %v190
    %v230 = vunpack.c.l.b16 %v191
    %v231 = vunpack.c.l.b16 %v192
    %v232 = vunpack.c.l.b16 %v193
    %v233 = vunpack.c.l.b16 %v194
    %v234 = vunpack.c.l.b16 %v195
    %v235 = vunpack.c.l.b16 %v196
    %v236 = vunpack.c.l.b16 %v197
    %v237 = vpack.c.b16 %v222, %v221
    %v238 = vpack.c.b16 %v224, %v223
    %v239 = vpack.c.b16 %v226, %v225
    %v240 = vpack.c.b16 %v228, %v227
    %v241 = vpack.c.b16 %v230, %v229
    %v242 = vpack.c.b16 %v232, %v231
    %v243 = vpack.c.b16 %v234, %v233
    %v244 = vpack.c.b16 %v236, %v235
    %253 = vmatprep.subr.bf16.mxu0 0
    %254 = vmatpush1.bf16.msra.mxu0 %v244
    %255 = vmatprep.subr.bf16.mxu0 0
    %256 = vmatpush1.bf16.msra.mxu0 %v243
    %257 = vmatprep.subr.bf16.mxu0 0
    %258 = vmatpush1.bf16.msra.mxu0 %v242
    %259 = vmatprep.subr.bf16.mxu0 0
    %260 = vmatpush1.bf16.msra.mxu0 %v241
    %261 = vmatprep.subr.bf16.mxu0 0
    %262 = vmatpush1.bf16.msra.mxu0 %v240
    %263 = vmatprep.subr.bf16.mxu0 0
    %264 = vmatpush1.bf16.msra.mxu0 %v239
    %265 = vmatprep.subr.bf16.mxu0 0
    %266 = vmatpush1.bf16.msra.mxu0 %v238
    %267 = vmatprep.subr.bf16.mxu0 0
    %268 = vmatpush1.bf16.msra.mxu0 %v237
    %269 = vmatprep.subr.bf16.mxu0 0
    %270 = vmatpush2.bf16.msra.mxu0 0
    %271 = vmatprep.subr.bf16.mxu0 0
    %272 = vmatpush2.bf16.msra.mxu0 0
    %273 = vmatprep.subr.bf16.mxu0 0
    %274 = vmatpush2.bf16.msra.mxu0 0
    %275 = vmatprep.subr.bf16.mxu0 0
    %276 = vmatpush2.bf16.msra.mxu0 0
    %277 = vmatprep.subr.bf16.mxu0 0
    %278 = vmatpush2.bf16.msra.mxu0 0
    %279 = vmatprep.subr.bf16.mxu0 0
    %280 = vmatpush2.bf16.msra.mxu0 0
    %281 = vmatprep.subr.bf16.mxu0 0
    %282 = vmatpush2.bf16.msra.mxu0 0
    %283 = vmatprep.subr.bf16.mxu0 0
    %284 = vmatpush2.bf16.msra.mxu0 0
    %285 = vmatprep.mubr.bf16.mxu0 0
    %286 = vmatmul.mubr.bf16.gmra.mxu0 %v181
    %v287 = vpop.f32.mrf.mxu0
    %v288 = vadd.f32 %v203, %v287
    %v289 = vpop.f32.mrf.mxu0
    %v290 = vpop.f32.mrf.mxu0
    %v291 = vpop.f32.mrf.mxu0
    %292 = vdwg.mxu0
    %v293 = vmax.f32 %v288, 0.0
    %v294 = vpack.c.bf16 %v293, %v293
    %v295 = vld [vmem:[#allocation6] sm:$0xf]
    %v296 = vld [vmem:[#allocation6 + $0x4] sm:$0xf]
    %v297 = vld [vmem:[#allocation6 + $0x8] sm:$0xf]
    %v298 = vld [vmem:[#allocation6 + $0xc] sm:$0xf]
    %v299 = vld [vmem:[#allocation6 + $0x10] sm:$0xf]
    %v300 = vld [vmem:[#allocation6 + $0x14] sm:$0xf]
    %v301 = vld [vmem:[#allocation6 + $0x18] sm:$0xf]
    %v302 = vld [vmem:[#allocation6 + $0x1c] sm:$0xf]
    %v303 = vld [vmem:[#allocation6 + $0x20] sm:$0xf]
    %v304 = vld [vmem:[#allocation6 + $0x24] sm:$0xf]
    %v305 = vld [vmem:[#allocation6 + $0x28] sm:$0xf]
    %v306 = vld [vmem:[#allocation6 + $0x2c] sm:$0xf]
    %v307 = vld [vmem:[#allocation6 + $0x30] sm:$0xf]
    %v308 = vld [vmem:[#allocation6 + $0x34] sm:$0xf]
    %v309 = vld [vmem:[#allocation6 + $0x38] sm:$0xf]
    %v310 = vld [vmem:[#allocation6 + $0x3c] sm:$0xf]
    %v311 = vld [vmem:[%s6] sm:$0x1]
    %v313 = vlaneseq
    %v314 = vshrl.u32 %v313, 7
    %v315 = vsub.s32 0, %v314
    %v316 = vrot.slane %v311, %v315
    %v334 = vunpack.c.l.b16 %v295
    %v335 = vunpack.c.l.b16 %v296
    %v336 = vunpack.c.l.b16 %v297
    %v337 = vunpack.c.l.b16 %v298
    %v338 = vunpack.c.l.b16 %v299
    %v339 = vunpack.c.l.b16 %v300
    %v340 = vunpack.c.l.b16 %v301
    %v341 = vunpack.c.l.b16 %v302
    %v342 = vunpack.c.l.b16 %v303
    %v343 = vunpack.c.l.b16 %v304
    %v344 = vunpack.c.l.b16 %v305
    %v345 = vunpack.c.l.b16 %v306
    %v346 = vunpack.c.l.b16 %v307
    %v347 = vunpack.c.l.b16 %v308
    %v348 = vunpack.c.l.b16 %v309
    %v349 = vunpack.c.l.b16 %v310
    %v350 = vpack.c.b16 %v335, %v334
    %v351 = vpack.c.b16 %v337, %v336
    %v352 = vpack.c.b16 %v339, %v338
    %v353 = vpack.c.b16 %v341, %v340
    %v354 = vpack.c.b16 %v343, %v342
    %v355 = vpack.c.b16 %v345, %v344
    %v356 = vpack.c.b16 %v347, %v346
    %v357 = vpack.c.b16 %v349, %v348
    %366 = vmatprep.subr.bf16.mxu0 0
    %367 = vmatpush1.bf16.msra.mxu0 %v357
    %368 = vmatprep.subr.bf16.mxu0 0
    %369 = vmatpush1.bf16.msra.mxu0 %v356
    %370 = vmatprep.subr.bf16.mxu0 0
    %371 = vmatpush1.bf16.msra.mxu0 %v355
    %372 = vmatprep.subr.bf16.mxu0 0
    %373 = vmatpush1.bf16.msra.mxu0 %v354
    %374 = vmatprep.subr.bf16.mxu0 0
    %375 = vmatpush1.bf16.msra.mxu0 %v353
    %376 = vmatprep.subr.bf16.mxu0 0
    %377 = vmatpush1.bf16.msra.mxu0 %v352
    %378 = vmatprep.subr.bf16.mxu0 0
    %379 = vmatpush1.bf16.msra.mxu0 %v351
    %380 = vmatprep.subr.bf16.mxu0 0
    %381 = vmatpush1.bf16.msra.mxu0 %v350
    %382 = vmatprep.subr.bf16.mxu0 0
    %383 = vmatpush2.bf16.msra.mxu0 0
    %384 = vmatprep.subr.bf16.mxu0 0
    %385 = vmatpush2.bf16.msra.mxu0 0
    %386 = vmatprep.subr.bf16.mxu0 0
    %387 = vmatpush2.bf16.msra.mxu0 0
    %388 = vmatprep.subr.bf16.mxu0 0
    %389 = vmatpush2.bf16.msra.mxu0 0
    %390 = vmatprep.subr.bf16.mxu0 0
    %391 = vmatpush2.bf16.msra.mxu0 0
    %392 = vmatprep.subr.bf16.mxu0 0
    %393 = vmatpush2.bf16.msra.mxu0 0
    %394 = vmatprep.subr.bf16.mxu0 0
    %395 = vmatpush2.bf16.msra.mxu0 0
    %396 = vmatprep.subr.bf16.mxu0 0
    %397 = vmatpush2.bf16.msra.mxu0 0
    %398 = vmatprep.mubr.bf16.mxu0 0
    %399 = vmatmul.mubr.bf16.gmra.mxu0 %v294
    %v400 = vpop.f32.mrf.mxu0
    %v401 = vadd.f32 %v316, %v400
    %v402 = vpop.f32.mrf.mxu0
    %v403 = vpop.f32.mrf.mxu0
    %v404 = vpop.f32.mrf.mxu0
    %405 = vdwg.mxu0
    %v406 = vmax.f32 %v401, 0.0
    %v407 = vpack.c.bf16 %v406, %v406
    %v408 = vld [vmem:[#allocation7] sm:$0xf]
    %v409 = vld [vmem:[#allocation7 + $0x4] sm:$0xf]
    %v410 = vld [vmem:[#allocation7 + $0x8] sm:$0xf]
    %v411 = vld [vmem:[#allocation7 + $0xc] sm:$0xf]
    %v412 = vld [vmem:[#allocation7 + $0x10] sm:$0xf]
    %v413 = vld [vmem:[#allocation7 + $0x14] sm:$0xf]
    %v414 = vld [vmem:[#allocation7 + $0x18] sm:$0xf]
    %v415 = vld [vmem:[#allocation7 + $0x1c] sm:$0xf]
    %v416 = vld [vmem:[#allocation7 + $0x20] sm:$0xf]
    %v417 = vld [vmem:[#allocation7 + $0x24] sm:$0xf]
    %v418 = vld [vmem:[#allocation7 + $0x28] sm:$0xf]
    %v419 = vld [vmem:[#allocation7 + $0x2c] sm:$0xf]
    %v420 = vld [vmem:[#allocation7 + $0x30] sm:$0xf]
    %v421 = vld [vmem:[#allocation7 + $0x34] sm:$0xf]
    %v422 = vld [vmem:[#allocation7 + $0x38] sm:$0xf]
    %v423 = vld [vmem:[#allocation7 + $0x3c] sm:$0xf]
    %v424 = vld [vmem:[%s8] sm:$0x1]
    %v426 = vlaneseq
    %v427 = vshrl.u32 %v426, 7
    %v428 = vsub.s32 0, %v427
    %v429 = vrot.slane %v424, %v428
    %v447 = vunpack.c.l.b16 %v408
    %v448 = vunpack.c.l.b16 %v409
    %v449 = vunpack.c.l.b16 %v410
    %v450 = vunpack.c.l.b16 %v411
    %v451 = vunpack.c.l.b16 %v412
    %v452 = vunpack.c.l.b16 %v413
    %v453 = vunpack.c.l.b16 %v414
    %v454 = vunpack.c.l.b16 %v415
    %v455 = vunpack.c.l.b16 %v416
    %v456 = vunpack.c.l.b16 %v417
    %v457 = vunpack.c.l.b16 %v418
    %v458 = vunpack.c.l.b16 %v419
    %v459 = vunpack.c.l.b16 %v420
    %v460 = vunpack.c.l.b16 %v421
    %v461 = vunpack.c.l.b16 %v422
    %v462 = vunpack.c.l.b16 %v423
    %v463 = vpack.c.b16 %v448, %v447
    %v464 = vpack.c.b16 %v450, %v449
    %v465 = vpack.c.b16 %v452, %v451
    %v466 = vpack.c.b16 %v454, %v453
    %v467 = vpack.c.b16 %v456, %v455
    %v468 = vpack.c.b16 %v458, %v457
    %v469 = vpack.c.b16 %v460, %v459
    %v470 = vpack.c.b16 %v462, %v461
    %479 = vmatprep.subr.bf16.mxu0 0
    %480 = vmatpush1.bf16.msra.mxu0 %v470
    %481 = vmatprep.subr.bf16.mxu0 0
    %482 = vmatpush1.bf16.msra.mxu0 %v469
    %483 = vmatprep.subr.bf16.mxu0 0
    %484 = vmatpush1.bf16.msra.mxu0 %v468
    %485 = vmatprep.subr.bf16.mxu0 0
    %486 = vmatpush1.bf16.msra.mxu0 %v467
    %487 = vmatprep.subr.bf16.mxu0 0
    %488 = vmatpush1.bf16.msra.mxu0 %v466
    %489 = vmatprep.subr.bf16.mxu0 0
    %490 = vmatpush1.bf16.msra.mxu0 %v465
    %491 = vmatprep.subr.bf16.mxu0 0
    %492 = vmatpush1.bf16.msra.mxu0 %v464
    %493 = vmatprep.subr.bf16.mxu0 0
    %494 = vmatpush1.bf16.msra.mxu0 %v463
    %495 = vmatprep.subr.bf16.mxu0 0
    %496 = vmatpush2.bf16.msra.mxu0 0
    %497 = vmatprep.subr.bf16.mxu0 0
    %498 = vmatpush2.bf16.msra.mxu0 0
    %499 = vmatprep.subr.bf16.mxu0 0
    %500 = vmatpush2.bf16.msra.mxu0 0
    %501 = vmatprep.subr.bf16.mxu0 0
    %502 = vmatpush2.bf16.msra.mxu0 0
    %503 = vmatprep.subr.bf16.mxu0 0
    %504 = vmatpush2.bf16.msra.mxu0 0
    %505 = vmatprep.subr.bf16.mxu0 0
    %506 = vmatpush2.bf16.msra.mxu0 0
    %507 = vmatprep.subr.bf16.mxu0 0
    %508 = vmatpush2.bf16.msra.mxu0 0
    %509 = vmatprep.subr.bf16.mxu0 0
    %510 = vmatpush2.bf16.msra.mxu0 0
    %511 = vmatprep.mubr.bf16.mxu0 0
    %512 = vmatmul.mubr.bf16.gmra.mxu0 %v407
    %v513 = vpop.f32.mrf.mxu0
    %v514 = vadd.f32 %v429, %v513
    %v515 = vpop.f32.mrf.mxu0
    %v516 = vpop.f32.mrf.mxu0
    %v517 = vpop.f32.mrf.mxu0
    %518 = vdwg.mxu0
    %v519 = vmax.f32 %v514, 0.0
    %v520 = vpack.c.bf16 %v519, %v519
    %v521 = vld [vmem:[%s9] sm:$0xf]
    %v522 = vld [vmem:[%s9 + $0x4] sm:$0xf]
    %v523 = vld [vmem:[%s9 + $0x8] sm:$0xf]
    %v524 = vld [vmem:[%s9 + $0xc] sm:$0xf]
    %v525 = vld [vmem:[%s9 + $0x10] sm:$0xf]
    %v526 = vld [vmem:[%s9 + $0x14] sm:$0xf]
    %v527 = vld [vmem:[%s9 + $0x18] sm:$0xf]
    %v528 = vld [vmem:[%s9 + $0x1c] sm:$0xf]
    %v529 = vld [vmem:[%s9 + $0x20] sm:$0xf]
    %v530 = vld [vmem:[%s9 + $0x24] sm:$0xf]
    %v531 = vld [vmem:[%s9 + $0x28] sm:$0xf]
    %v532 = vld [vmem:[%s9 + $0x2c] sm:$0xf]
    %v533 = vld [vmem:[%s9 + $0x30] sm:$0xf]
    %v534 = vld [vmem:[%s9 + $0x34] sm:$0xf]
    %v535 = vld [vmem:[%s9 + $0x38] sm:$0xf]
    %v536 = vld [vmem:[%s9 + $0x3c] sm:$0xf]
    %v537 = vld [vmem:[%s10] sm:$0x1]
    %v539 = vlaneseq
    %v540 = vshrl.u32 %v539, 7
    %v541 = vsub.s32 0, %v540
    %v542 = vrot.slane %v537, %v541
    %v560 = vunpack.c.l.b16 %v521
    %v561 = vunpack.c.l.b16 %v522
    %v562 = vunpack.c.l.b16 %v523
    %v563 = vunpack.c.l.b16 %v524
    %v564 = vunpack.c.l.b16 %v525
    %v565 = vunpack.c.l.b16 %v526
    %v566 = vunpack.c.l.b16 %v527
    %v567 = vunpack.c.l.b16 %v528
    %v568 = vunpack.c.l.b16 %v529
    %v569 = vunpack.c.l.b16 %v530
    %v570 = vunpack.c.l.b16 %v531
    %v571 = vunpack.c.l.b16 %v532
    %v572 = vunpack.c.l.b16 %v533
    %v573 = vunpack.c.l.b16 %v534
    %v574 = vunpack.c.l.b16 %v535
    %v575 = vunpack.c.l.b16 %v536
    %v576 = vpack.c.b16 %v561, %v560
    %v577 = vpack.c.b16 %v563, %v562
    %v578 = vpack.c.b16 %v565, %v564
    %v579 = vpack.c.b16 %v567, %v566
    %v580 = vpack.c.b16 %v569, %v568
    %v581 = vpack.c.b16 %v571, %v570
    %v582 = vpack.c.b16 %v573, %v572
    %v583 = vpack.c.b16 %v575, %v574
    %592 = vmatprep.subr.bf16.mxu0 0
    %593 = vmatpush1.bf16.msra.mxu0 %v583
    %594 = vmatprep.subr.bf16.mxu0 0
    %595 = vmatpush1.bf16.msra.mxu0 %v582
    %596 = vmatprep.subr.bf16.mxu0 0
    %597 = vmatpush1.bf16.msra.mxu0 %v581
    %598 = vmatprep.subr.bf16.mxu0 0
    %599 = vmatpush1.bf16.msra.mxu0 %v580
    %600 = vmatprep.subr.bf16.mxu0 0
    %601 = vmatpush1.bf16.msra.mxu0 %v579
    %602 = vmatprep.subr.bf16.mxu0 0
    %603 = vmatpush1.bf16.msra.mxu0 %v578
    %604 = vmatprep.subr.bf16.mxu0 0
    %605 = vmatpush1.bf16.msra.mxu0 %v577
    %606 = vmatprep.subr.bf16.mxu0 0
    %607 = vmatpush1.bf16.msra.mxu0 %v576
    %608 = vmatprep.subr.bf16.mxu0 0
    %609 = vmatpush2.bf16.msra.mxu0 0
    %610 = vmatprep.subr.bf16.mxu0 0
    %611 = vmatpush2.bf16.msra.mxu0 0
    %612 = vmatprep.subr.bf16.mxu0 0
    %613 = vmatpush2.bf16.msra.mxu0 0
    %614 = vmatprep.subr.bf16.mxu0 0
    %615 = vmatpush2.bf16.msra.mxu0 0
    %616 = vmatprep.subr.bf16.mxu0 0
    %617 = vmatpush2.bf16.msra.mxu0 0
    %618 = vmatprep.subr.bf16.mxu0 0
    %619 = vmatpush2.bf16.msra.mxu0 0
    %620 = vmatprep.subr.bf16.mxu0 0
    %621 = vmatpush2.bf16.msra.mxu0 0
    %622 = vmatprep.subr.bf16.mxu0 0
    %623 = vmatpush2.bf16.msra.mxu0 0
    %624 = vmatprep.mubr.bf16.mxu0 0
    %625 = vmatmul.mubr.bf16.gmra.mxu0 %v520
    %v626 = vpop.f32.mrf.mxu0
    %v627 = vadd.f32 %v542, %v626
    %v628 = vpop.f32.mrf.mxu0
    %v629 = vpop.f32.mrf.mxu0
    %v630 = vpop.f32.mrf.mxu0
    %631 = vdwg.mxu0
    %v632 = vxor.u32 %v627, 2147483648
    %v633 = vmul.f32 %v632, 1.442695
    %v634 = vpow.pop %v633
    %v635 = vadd.f32 %v634, 1.0
    %v636 = vrcp.pop %v635
    %v637 = vmul.f32 1.0, %v636
    %vm638 = vcmask 15360
    %639 = vst.msk [vmem:[%s11] sm:$0xff] %vm638, %v637
    // Predicated region
    $region62: #{tpu_custom_call.1} parent=1 // pred_check
      _
    $region63: #{tpu_custom_call.1} parent=1 // pred_check_branch
      %641 = sbr.rel (0) target = $region65
    $region64: #{tpu_custom_call.1} parent=1 // pred_region
      _
    $region65: #{tpu_custom_call.1} parent=1 // pred_fallthru
      _
    // Predicated region
    $region66: #{tpu_custom_call.1} parent=1 // pred_check
      _
    $region67: #{tpu_custom_call.1} parent=1 // pred_check_branch
      %643 = sbr.rel (0) target = $region69
    $region68: #{tpu_custom_call.1} parent=1 // pred_region
      _
    $region69: #{tpu_custom_call.1} parent=1 // pred_fallthru
      _
    %644 = vsyncpa [#allocation3], 1
    %645 = vsyncpa [#allocation5], 1
    %646 = vsyncpa [#allocation8], 1

</llo_original>
